<compile_context>
chip_gen: v5e
topology: v5e:2x2
jax: 0.10.0
libtpu: 0.0.40
codegen_flags: <defaults>
</compile_context>

<pallas_src>
import jax
import jax.numpy as jnp
from jax import lax
from jax.experimental import pallas as pl
from jax.experimental.pallas import tpu as pltpu


def _round_up(x: int, m: int) -> int:
    return ((x + m - 1) // m) * m


def _make_kernel(n_total: int, n_classes: int, tile_n: int, tiles_per_p: int):
    """Kernel closed over static batch size, class count, tile size and per-core tile count."""
    C = n_classes

    def kernel(logits_ref, labels_ref, trans_ref, out_ref, acc_ref):
        p = pl.program_id(0)   # parallel axis (split across TensorCores on v7x)
        i = pl.program_id(1)   # reduction over batch tiles (this core's share)

        @pl.when(i == 0)
        def _init():
            acc_ref[...] = jnp.zeros_like(acc_ref)

        # ---- exact softmax over classes (per-row max shift) ----
        logits = logits_ref[...].astype(jnp.float32)              # (TN, C)
        m = jnp.max(logits, axis=1, keepdims=True)                # (TN, 1)
        e = jnp.exp(logits - m)                                   # (TN, C)
        # TODO(synk): exp above is lane-sparse for C << 128; needs a (C, TN) tile layout.
        denom = jnp.sum(e, axis=1, keepdims=True)                 # (TN, 1)
        probs = e / denom                                         # (TN, C)

        # ---- adjusted_probs.T = Transition @ probs.T via NT dot_general on the MXU ----
        # Output lands in a lane-major (C, TN) layout so everything downstream is lane-dense.
        adj_t = lax.dot_general(trans_ref[...], probs,
                                (((1,), (1,)), ((), ())),
                                preferred_element_type=jnp.float32)   # (C, TN)

        # ---- one-hot select FIRST, log SECOND (only TN transcendentals, lane-major) ----
        labels = labels_ref[...]                                   # (1, TN) int32
        rows = lax.broadcasted_iota(jnp.int32, (C, tile_n), 0)
        sel = jnp.sum(jnp.where(rows == labels, adj_t, 0.0),
                      axis=0, keepdims=True)                       # (1, TN)
        row_loss = -jnp.log(sel + 1e-5)                            # (1, TN)

        # ---- mask lanes past the true batch (ragged last tile / over-covered grid) ----
        n_base = (p * tiles_per_p + i) * tile_n
        idx = n_base + lax.broadcasted_iota(jnp.int32, row_loss.shape, 1)
        acc_ref[...] += jnp.where(idx < n_total, row_loss, 0.0)

        @pl.when(i == tiles_per_p - 1)
        def _finalize():
            part = jnp.sum(acc_ref[...])                           # this core's partial sum
            out_ref[...] = jnp.broadcast_to(part, out_ref.shape).astype(out_ref.dtype)

    return kernel


def noise_aware_ce_loss(logits, labels, transition, *, tile_n=None):
    """logits: (N, C), labels: (N,) int, transition: (C, C) f32 -> scalar f32 mean loss."""
    N, C = logits.shape
    itemsize = jnp.dtype(logits.dtype).itemsize

    # ---- generation-aware VMEM budget (v7x 64MiB -> ~48MiB, v5e/v6e 128MiB -> ~96MiB) ----
    try:
        vmem_cap = int(pltpu.get_tpu_info().vmem_capacity_bytes)
    except Exception:
        vmem_cap = 64 * 1024 * 1024
    vmem_budget = (vmem_cap * 3) // 4

    def est_vmem(tn):
        in_bufs = 2 * tn * C * itemsize + 2 * tn * 4 + 2 * C * C * 4   # double-buffered inputs
        temps = 6 * tn * C * 4 + 8 * tn * 4                            # f32 body intermediates
        return in_bufs + temps + tn * 4 + (1 << 16)

    # ---- VMEM-budget-derived batch tile: target ~2 MiB logits blocks, multiple of 128 ----
    if tile_n is None:
        tile_n = max(128, ((2 << 20) // max(1, C * itemsize)) // 128 * 128)
    tile_n = max(128, (int(tile_n) // 128) * 128)
    tile_n = min(tile_n, _round_up(N, 128))
    while tile_n > 128 and est_vmem(tile_n) > (vmem_budget * 7) // 10:
        tile_n = max(128, (tile_n // 2 // 128) * 128)

    total_tiles = pl.cdiv(N, tile_n)
    num_parallel = 2 if total_tiles >= 2 else 1     # 2-TC split on v7x; serial no-op on 1-TC chips
    tiles_per_p = pl.cdiv(total_tiles, num_parallel)

    # Lane-major labels (free reshape, no HBM pass); Transition stays (C, C), no transpose.
    labels_row = labels.reshape(1, N).astype(jnp.int32)
    trans = jnp.asarray(transition, dtype=jnp.float32)

    def logits_map(p, i):
        return (jnp.minimum(p * tiles_per_p + i, total_tiles - 1), 0)

    def labels_map(p, i):
        return (0, jnp.minimum(p * tiles_per_p + i, total_tiles - 1))

    out = pl.pallas_call(
        _make_kernel(N, C, tile_n, tiles_per_p),
        out_shape=jax.ShapeDtypeStruct((num_parallel, 1, 128), jnp.float32),
        grid_spec=pltpu.PrefetchScalarGridSpec(
            num_scalar_prefetch=0,
            grid=(num_parallel, tiles_per_p),
            in_specs=[
                pl.BlockSpec((tile_n, C), logits_map),        # logits tile, native dtype
                pl.BlockSpec((1, tile_n), labels_map),        # labels tile, lane-major
                pl.BlockSpec((C, C), lambda p, i: (0, 0)),    # Transition, resident in VMEM
            ],
            out_specs=pl.BlockSpec((1, 1, 128), lambda p, i: (p, 0, 0)),  # per-core partial sum
            scratch_shapes=[pltpu.VMEM((1, tile_n), jnp.float32)],        # per-core accumulator
        ),
        compiler_params=pltpu.CompilerParams(
            dimension_semantics=("parallel", "arbitrary"),
            vmem_limit_bytes=int(vmem_budget),
        ),
    )(logits, labels_row, trans)

    return jnp.sum(out[:, 0, 0]) / jnp.float32(N)


def _reference(logits, labels, transition):
    probs = jax.nn.softmax(logits, axis=1)
    adj = probs @ transition.T
    one_hot = jax.nn.one_hot(labels, probs.shape[1], dtype=jnp.float32)
    loss = -jnp.sum(jnp.log(adj + 1e-5) * one_hot, axis=1)
    return jnp.mean(loss)


if __name__ == "__main__":
    key = jax.random.PRNGKey(0)
    k_logits, k_labels, k_logits2, k_labels2 = jax.random.split(key, 4)

    C = 16
    eye = jnp.eye(C, dtype=jnp.float32)
    transition = eye * 0.9 + (1.0 - eye) * (0.1 / (C - 1))   # row-stochastic

    # Case 1: N multiple of 128, auto tile -> single block, single partial.
    N1 = 256
    logits1 = jax.random.normal(k_logits, (N1, C), dtype=jnp.float32)
    labels1 = jax.random.randint(k_labels, (N1,), 0, C, dtype=jnp.int32)
    loss1 = jax.block_until_ready(noise_aware_ce_loss(logits1, labels1, transition))
    ref1 = jax.block_until_ready(_reference(logits1, labels1, transition))
    assert jnp.allclose(loss1, ref1, atol=2e-5, rtol=1e-5), (loss1, ref1)

    # Case 2: forced small tile -> 4 tiles, 2-way parallel split + per-core accumulation.
    N2 = 512
    logits2 = jax.random.normal(k_logits2, (N2, C), dtype=jnp.float32)
    labels2 = jax.random.randint(k_labels2, (N2,), 0, C, dtype=jnp.int32)
    loss2 = jax.block_until_ready(noise_aware_ce_loss(logits2, labels2, transition, tile_n=128))
    ref2 = jax.block_until_ready(_reference(logits2, labels2, transition))
    assert jnp.allclose(loss2, ref2, atol=2e-5, rtol=1e-5), (loss2, ref2)

    # Case 3: ragged batch (N % 128 != 0) -> partial last block + in-kernel lane mask.
    N3 = 250
    loss3 = jax.block_until_ready(noise_aware_ce_loss(logits1[:N3], labels1[:N3], transition))
    ref3 = jax.block_until_ready(_reference(logits1[:N3], labels1[:N3], transition))
    assert jnp.allclose(loss3, ref3, atol=2e-5, rtol=1e-5), (loss3, ref3)

    print("KERNEL_OK")
</pallas_src>

<mosaic_0001>
module attributes {stable_mosaic.version = 11 : i64} {
  func.func @kernel(%arg0: i32, %arg1: i32, %arg2: memref<256x16xf32, #tpu.memory_space<vmem>>, %arg3: memref<1x256xi32, #tpu.memory_space<vmem>>, %arg4: memref<16x16xf32, #tpu.memory_space<vmem>>, %arg5: memref<1x1x128xf32, #tpu.memory_space<vmem>>, %arg6: memref<1x256xf32, #tpu.memory_space<vmem>>) attributes {dimension_semantics = [#tpu.dimension_semantics<parallel>, #tpu.dimension_semantics<arbitrary>], iteration_bounds = array<i64: 1, 1>, scalar_prefetch = 0 : i64, scratch_operands = 1 : i64, tpu.core_type = #tpu.core_type<tc>, window_params = [{transform_indices = @transform_0, window_bounds = array<i64: 256, 16>}, {transform_indices = @transform_1, window_bounds = array<i64: 1, 256>}, {pipeline_mode = #tpu.pipeline_mode<synchronous>, transform_indices = @transform_2, window_bounds = array<i64: 16, 16>}, {transform_indices = @transform_3, window_bounds = array<i64: 1, 1, 128>}]} {
    %c0_i32 = arith.constant 0 : i32
    %0 = arith.cmpi eq, %arg1, %c0_i32 : i32
    %1 = arith.extui %0 : i1 to i32
    %c0_i32_0 = arith.constant 0 : i32
    %2 = arith.cmpi ne, %1, %c0_i32_0 : i32
    scf.if %2 {
      %cst_20 = arith.constant 0.000000e+00 : f32
      %44 = vector.broadcast %cst_20 : f32 to vector<1x256xf32>
      %c0_21 = arith.constant 0 : index
      %c0_22 = arith.constant 0 : index
      %45 = vector.load %arg6[%c0_21, %c0_22] : memref<1x256xf32, #tpu.memory_space<vmem>>, vector<1x256xf32>
      tpu.vector_store %arg6[%c0_21, %c0_22], %44 {strides = array<i32>} : memref<1x256xf32, #tpu.memory_space<vmem>>, vector<1x256xf32>,
    } else {
    }
    %c0 = arith.constant 0 : index
    %c0_1 = arith.constant 0 : index
    %3 = vector.load %arg2[%c0, %c0_1] : memref<256x16xf32, #tpu.memory_space<vmem>>, vector<256x16xf32>
    %cst = arith.constant dense<0xFF800000> : vector<256xf32>
    %4 = vector.multi_reduction <maximumf>, %3, %cst [1] : vector<256x16xf32> to vector<256xf32>
    %5 = vector.shape_cast %4 : vector<256xf32> to vector<256x1xf32>
    %6 = vector.broadcast %5 : vector<256x1xf32> to vector<256x16xf32>
    %7 = arith.subf %3, %6 : vector<256x16xf32>
    %8 = math.exp %7 : vector<256x16xf32>
    %cst_2 = arith.constant dense<0.000000e+00> : vector<256xf32>
    %9 = vector.multi_reduction <add>, %8, %cst_2 [1] : vector<256x16xf32> to vector<256xf32>
    %10 = vector.shape_cast %9 : vector<256xf32> to vector<256x1xf32>
    %11 = vector.broadcast %10 : vector<256x1xf32> to vector<256x16xf32>
    %12 = arith.divf %8, %11 : vector<256x16xf32>
    %c0_3 = arith.constant 0 : index
    %c0_4 = arith.constant 0 : index
    %13 = vector.load %arg4[%c0_3, %c0_4] : memref<16x16xf32, #tpu.memory_space<vmem>>, vector<16x16xf32>
    %cst_5 = arith.constant dense<0.000000e+00> : vector<16x256xf32>
    %14 = tpu.matmul %13, %12, %cst_5 {dimension_numbers = #tpu.dot_dimension_numbers<[1], [1], [0], [0], [0, 0, 1, 0], [], []>} : vector<16x16xf32>, vector<256x16xf32>, vector<16x256xf32> -> vector<16x256xf32>
    %c0_6 = arith.constant 0 : index
    %c0_7 = arith.constant 0 : index
    %15 = vector.load %arg3[%c0_6, %c0_7] : memref<1x256xi32, #tpu.memory_space<vmem>>, vector<1x256xi32>
    %16 = tpu.iota {dimensions = array<i32: 0>} : vector<16x256xi32>
    %17 = vector.broadcast %15 : vector<1x256xi32> to vector<16x256xi32>
    %18 = arith.cmpi eq, %16, %17 : vector<16x256xi32>
    %cst_8 = arith.constant 0.000000e+00 : f32
    %19 = vector.broadcast %cst_8 : f32 to vector<16x256xf32>
    %20 = arith.select %18, %14, %19 : vector<16x256xi1>, vector<16x256xf32>
    %cst_9 = arith.constant dense<0.000000e+00> : vector<256xf32>
    %21 = vector.multi_reduction <add>, %20, %cst_9 [0] : vector<16x256xf32> to vector<256xf32>
    %22 = vector.shape_cast %21 : vector<256xf32> to vector<1x256xf32>
    %cst_10 = arith.constant 9.99999974E-6 : f32
    %23 = vector.broadcast %cst_10 : f32 to vector<1x256xf32>
    %24 = arith.addf %22, %23 : vector<1x256xf32>
    %25 = math.log %24 : vector<1x256xf32>
    %cst_11 = arith.constant 0.000000e+00 : f32
    %26 = vector.broadcast %cst_11 : f32 to vector<1x256xf32>
    %27 = arith.subf %26, %25 : vector<1x256xf32>
    %c1_i32 = arith.constant 1 : i32
    %28 = arith.muli %arg0, %c1_i32 : i32
    %29 = arith.addi %28, %arg1 : i32
    %c256_i32 = arith.constant 256 : i32
    %30 = arith.muli %29, %c256_i32 : i32
    %31 = tpu.iota {dimensions = array<i32: 1>} : vector<1x256xi32>
    %32 = vector.broadcast %30 : i32 to vector<1x256xi32>
    %33 = arith.addi %32, %31 : vector<1x256xi32>
    %c0_12 = arith.constant 0 : index
    %c0_13 = arith.constant 0 : index
    %34 = vector.load %arg6[%c0_12, %c0_13] : memref<1x256xf32, #tpu.memory_space<vmem>>, vector<1x256xf32>
    %c256_i32_14 = arith.constant 256 : i32
    %35 = vector.broadcast %c256_i32_14 : i32 to vector<1x256xi32>
    %36 = arith.cmpi slt, %33, %35 : vector<1x256xi32>
    %cst_15 = arith.constant 0.000000e+00 : f32
    %37 = vector.broadcast %cst_15 : f32 to vector<1x256xf32>
    %38 = arith.select %36, %27, %37 : vector<1x256xi1>, vector<1x256xf32>
    %39 = arith.addf %34, %38 : vector<1x256xf32>
    %c0_16 = arith.constant 0 : index
    %c0_17 = arith.constant 0 : index
    %40 = vector.load %arg6[%c0_16, %c0_17] : memref<1x256xf32, #tpu.memory_space<vmem>>, vector<1x256xf32>
    tpu.vector_store %arg6[%c0_16, %c0_17], %39 {strides = array<i32>} : memref<1x256xf32, #tpu.memory_space<vmem>>, vector<1x256xf32>,
    %c0_i32_18 = arith.constant 0 : i32
    %41 = arith.cmpi eq, %arg1, %c0_i32_18 : i32
    %42 = arith.extui %41 : i1 to i32
    %c0_i32_19 = arith.constant 0 : i32
    %43 = arith.cmpi ne, %42, %c0_i32_19 : i32
    scf.if %43 {
      %c0_20 = arith.constant 0 : index
      %c0_21 = arith.constant 0 : index
      %44 = vector.load %arg6[%c0_20, %c0_21] : memref<1x256xf32, #tpu.memory_space<vmem>>, vector<1x256xf32>
      %45 = vector.shape_cast %44 : vector<1x256xf32> to vector<1x1x256xf32>
      %cst_22 = arith.constant dense<0.000000e+00> : vector<1xf32>
      %46 = vector.multi_reduction <add>, %45, %cst_22 [1, 2] : vector<1x1x256xf32> to vector<1xf32>
      %47 = vector.shape_cast %46 : vector<1xf32> to vector<1x1x1xf32>
      %48 = vector.extract %47[0, 0, 0] : f32 from vector<1x1x1xf32>
      %49 = vector.broadcast %48 : f32 to vector<1x1x128xf32>
      %c0_23 = arith.constant 0 : index
      %c0_24 = arith.constant 0 : index
      %c0_25 = arith.constant 0 : index
      %50 = vector.load %arg5[%c0_23, %c0_24, %c0_25] : memref<1x1x128xf32, #tpu.memory_space<vmem>>, vector<1x1x128xf32>
      tpu.vector_store %arg5[%c0_23, %c0_24, %c0_25], %49 {strides = array<i32>} : memref<1x1x128xf32, #tpu.memory_space<vmem>>, vector<1x1x128xf32>,
    } else {
    }
    return
  }
  func.func @transform_0(%arg0: i32, %arg1: i32) -> (i32, i32) {
    %c1_i32 = arith.constant 1 : i32
    %0 = arith.muli %arg0, %c1_i32 : i32
    %1 = arith.addi %0, %arg1 : i32
    %c0_i32 = arith.constant 0 : i32
    %2 = arith.minsi %1, %c0_i32 : i32
    %c0_i32_0 = arith.constant 0 : i32
    %c0_i32_1 = arith.constant 0 : i32
    return %2, %c0_i32_0 : i32, i32
  }
  func.func @transform_1(%arg0: i32, %arg1: i32) -> (i32, i32) {
    %c1_i32 = arith.constant 1 : i32
    %0 = arith.muli %arg0, %c1_i32 : i32
    %1 = arith.addi %0, %arg1 : i32
    %c0_i32 = arith.constant 0 : i32
    %2 = arith.minsi %1, %c0_i32 : i32
    %c0_i32_0 = arith.constant 0 : i32
    %c0_i32_1 = arith.constant 0 : i32
    return %c0_i32_0, %2 : i32, i32
  }
  func.func @transform_2(%arg0: i32, %arg1: i32) -> (i32, i32) {
    %c0_i32 = arith.constant 0 : i32
    %c0_i32_0 = arith.constant 0 : i32
    %c0_i32_1 = arith.constant 0 : i32
    return %c0_i32, %c0_i32_0 : i32, i32
  }
  func.func @transform_3(%arg0: i32, %arg1: i32) -> (i32, i32, i32) {
    %c0_i32 = arith.constant 0 : i32
    %c0_i32_0 = arith.constant 0 : i32
    %c0_i32_1 = arith.constant 0 : i32
    return %arg0, %c0_i32, %c0_i32_0 : i32, i32, i32
  }
}

</mosaic_0001>

<llo_original>
// kernel: tpu_custom_call.1
$region0: #{tpu_custom_call.1}
  #allocation0 [shape = 'u32[]', space=smem, size = 0x4, offset = 0x4, fixed_abs, tag = 'smem constant byte address 0x4 - core index']
  #allocation1 [shape = 'u32[72,128]{1,0:T(1,128)}', space=vmem, size = 0x9000, scoped, tag = 'internal scratch']
  #allocation2 [shape = 'f32[1,256]{1,0:T(1,128)}', space=vmem, size = 0x400, scoped, tag = 'scratch operand']
  %s0 = inlined_call_operand.vmem [shape: f32[256,16], index: 0, kind: input, shape index: {}]
  %s1 = inlined_call_operand.vmem [shape: s32[1,256], index: 1, kind: input, shape index: {}]
  %s2 = inlined_call_operand.vmem [shape: f32[16,16], index: 2, kind: input, shape index: {}]
  %s3 = inlined_call_operand.hbm [shape: f32[1,1,128], index: 3, kind: output, shape index: {}]
  %s4 = sld [smem:[#allocation0]]
  $region30: #{tpu_custom_call.1} parent=0
    _
  %s6 = ssub.s32 1, %s4
  %s7 = scalar_select 0, %s6, %s4
  $region1: #{tpu_custom_call.1} parent=0
    #allocation3 [shape = 'u8[512]{0}', space=vmem, size = 0x400, scoped, tag = 'output window, operand 0, single buffered']
    #allocation4 [shape = 's32[1]{0}', space=sflag, size = 0x4, scoped, tag = 'scoped memory for tpu_custom_call.1']
    %8 = vsyncpa [#allocation4], 0
    // Predicated region
    $region2: #{tpu_custom_call.1} parent=1 // pred_check
      _
    $region3: #{tpu_custom_call.1} parent=1 // pred_check_branch
      %10 = sbr.rel (0) target = $region5
    $region4: #{tpu_custom_call.1} parent=1 // pred_region
      %s11 = sadd.s32 0, 0
      %p12 = scmp.lt.s32.totalorder %s11, 0
      %s13 = scalar_select %p12, %s11, 0
      %s14 = smul.u32 32, %s13
      %p15 = scmp.lt.s32.totalorder %s14, 31
      %s16 = scalar_select %p15, %s14, 31
      %s17 = smul.addr %s16, 8
      %s18 = scalar_lea.vmem %s0, %s17
      %s19 = sadd.s32 0, 0
      %p20 = scmp.lt.s32.totalorder %s19, 0
      %s21 = scalar_select %p20, %s19, 0
      %s22 = smul.u32 32, %s21
    $region5: #{tpu_custom_call.1} parent=1 // pred_fallthru
      _
    // Predicated region
    $region6: #{tpu_custom_call.1} parent=1 // pred_check
      _
    $region7: #{tpu_custom_call.1} parent=1 // pred_check_branch
      %24 = sbr.rel (0) target = $region9
    $region8: #{tpu_custom_call.1} parent=1 // pred_region
      %s25 = sadd.s32 0, 0
      %p26 = scmp.lt.s32.totalorder %s25, 0
      %s27 = scalar_select %p26, %s25, 0
      %s28 = smul.u32 2, %s27
      %p29 = scmp.lt.s32.totalorder %s28, 1
      %s30 = scalar_select %p29, %s28, 1
      %s31 = scalar_lea.vmem %s1, %s30
      %s32 = sadd.s32 0, 0
      %p33 = scmp.lt.s32.totalorder %s32, 0
      %s34 = scalar_select %p33, %s32, 0
      %s35 = smul.u32 2, %s34
    $region9: #{tpu_custom_call.1} parent=1 // pred_fallthru
      _
    // Predicated region
    $region10: #{tpu_custom_call.1} parent=1 // pred_check
      _
    $region11: #{tpu_custom_call.1} parent=1 // pred_check_branch
      %37 = sbr.rel (0) target = $region13
    $region12: #{tpu_custom_call.1} parent=1 // pred_region
      _
    $region13: #{tpu_custom_call.1} parent=1 // pred_fallthru
      _
    %s38 = sadd.s32 0, 0
    %p39 = scmp.lt.s32.totalorder %s38, 0
    %s40 = scalar_select %p39, %s38, 0
    %s41 = smul.u32 32, %s40
    %p42 = scmp.lt.s32.totalorder %s41, 31
    %s43 = scalar_select %p42, %s41, 31
    %s44 = smul.addr %s43, 8
    %s45 = scalar_lea.vmem %s0, %s44
    %s46 = sadd.s32 0, 0
    %p47 = scmp.lt.s32.totalorder %s46, 0
    %s48 = scalar_select %p47, %s46, 0
    %s49 = smul.u32 2, %s48
    %p50 = scmp.lt.s32.totalorder %s49, 1
    %s51 = scalar_select %p50, %s49, 1
    %s52 = scalar_lea.vmem %s1, %s51
    %s53 = sadd.s32 0, 0
    %p54 = scmp.lt.s32.totalorder %s53, 0
    %s55 = scalar_select %p54, %s53, 0
    %s56 = smul.u32 32, %s55
    %p57 = scmp.lt.s32.totalorder %s56, 31
    %s58 = scalar_select %p57, %s56, 31
    %s59 = smul.addr %s58, 8
    %s60 = scalar_lea.vmem %s0, %s59
    %s61 = sadd.s32 0, 0
    %p62 = scmp.lt.s32.totalorder %s61, 0
    %s63 = scalar_select %p62, %s61, 0
    %s64 = smul.u32 32, %s63
    %s65 = sadd.s32 0, 0
    %p66 = scmp.lt.s32.totalorder %s65, 0
    %s67 = scalar_select %p66, %s65, 0
    %s68 = smul.u32 2, %s67
    %p69 = scmp.lt.s32.totalorder %s68, 1
    %s70 = scalar_select %p69, %s68, 1
    %s71 = scalar_lea.vmem %s1, %s70
    %s72 = sadd.s32 0, 0
    %p73 = scmp.lt.s32.totalorder %s72, 0
    %s74 = scalar_select %p73, %s72, 0
    %s75 = smul.u32 2, %s74
    %p76 = scmp.eq.s32.totalorder 0, 0
    // Predicated region
    $region14: #{tpu_custom_call.1} parent=1 // pred_check
      %p77 = pneg %p76
    $region15: #{tpu_custom_call.1} parent=1 // pred_check_branch
      %79 = sbr.rel (%p77) target = $region17
    $region16: #{tpu_custom_call.1} parent=1 // pred_region
      %v80 = vlaneseq
      %vm81 = vcmp.ge.s32.totalorder %v80, 0
      %vm82 = vcmp.lt.s32.totalorder %v80, 256
      %vm83 = vmand %vm81, %vm82
      %84 = vst.msk [vmem:[#allocation2] sm:$0x3] %vm83, 0.0
    $region17: #{tpu_custom_call.1} parent=1 // pred_fallthru
      _
    %v85 = vld [vmem:[%s60] sm:$0xff]
    %v86 = vld [vmem:[%s60 + $0x8] sm:$0xff]
    %v87 = vld [vmem:[%s60 + $0x10] sm:$0xff]
    %v88 = vld [vmem:[%s60 + $0x18] sm:$0xff]
    %v89 = vld [vmem:[%s60 + $0x20] sm:$0xff]
    %v90 = vld [vmem:[%s60 + $0x28] sm:$0xff]
    %v91 = vld [vmem:[%s60 + $0x30] sm:$0xff]
    %v92 = vld [vmem:[%s60 + $0x38] sm:$0xff]
    %v93 = vld [vmem:[%s60 + $0x40] sm:$0xff]
    %v94 = vld [vmem:[%s60 + $0x48] sm:$0xff]
    %v95 = vld [vmem:[%s60 + $0x50] sm:$0xff]
    %v96 = vld [vmem:[%s60 + $0x58] sm:$0xff]
    %v97 = vld [vmem:[%s60 + $0x60] sm:$0xff]
    %v98 = vld [vmem:[%s60 + $0x68] sm:$0xff]
    %v99 = vld [vmem:[%s60 + $0x70] sm:$0xff]
    %v100 = vld [vmem:[%s60 + $0x78] sm:$0xff]
    %v101 = vld [vmem:[%s60 + $0x80] sm:$0xff]
    %v102 = vld [vmem:[%s60 + $0x88] sm:$0xff]
    %v103 = vld [vmem:[%s60 + $0x90] sm:$0xff]
    %v104 = vld [vmem:[%s60 + $0x98] sm:$0xff]
    %v105 = vld [vmem:[%s60 + $0xa0] sm:$0xff]
    %v106 = vld [vmem:[%s60 + $0xa8] sm:$0xff]
    %v107 = vld [vmem:[%s60 + $0xb0] sm:$0xff]
    %v108 = vld [vmem:[%s60 + $0xb8] sm:$0xff]
    %v109 = vld [vmem:[%s60 + $0xc0] sm:$0xff]
    %v110 = vld [vmem:[%s60 + $0xc8] sm:$0xff]
    %v111 = vld [vmem:[%s60 + $0xd0] sm:$0xff]
    %v112 = vld [vmem:[%s60 + $0xd8] sm:$0xff]
    %v113 = vld [vmem:[%s60 + $0xe0] sm:$0xff]
    %v114 = vld [vmem:[%s60 + $0xe8] sm:$0xff]
    %v115 = vld [vmem:[%s60 + $0xf0] sm:$0xff]
    %v116 = vld [vmem:[%s60 + $0xf8] sm:$0xff]
    %vm117 = vcmask 130048
    %v118 = vsel %vm117, %v85, -inf
    %119 = vmax.xlane.f32.xlu0 %v118
    %v120 = vpop.xlane.xlu0 %119
    %v121 = vsel %vm117, %v86, -inf
    %122 = vmax.xlane.f32.xlu0 %v121
    %v123 = vpop.xlane.xlu0 %122
    %v124 = vsel %vm117, %v87, -inf
    %125 = vmax.xlane.f32.xlu0 %v124
    %v126 = vpop.xlane.xlu0 %125
    %v127 = vsel %vm117, %v88, -inf
    %128 = vmax.xlane.f32.xlu0 %v127
    %v129 = vpop.xlane.xlu0 %128
    %v130 = vsel %vm117, %v89, -inf
    %131 = vmax.xlane.f32.xlu0 %v130
    %v132 = vpop.xlane.xlu0 %131
    %v133 = vsel %vm117, %v90, -inf
    %134 = vmax.xlane.f32.xlu0 %v133
    %v135 = vpop.xlane.xlu0 %134
    %v136 = vsel %vm117, %v91, -inf
    %137 = vmax.xlane.f32.xlu0 %v136
    %v138 = vpop.xlane.xlu0 %137
    %v139 = vsel %vm117, %v92, -inf
    %140 = vmax.xlane.f32.xlu0 %v139
    %v141 = vpop.xlane.xlu0 %140
    %v142 = vsel %vm117, %v93, -inf
    %143 = vmax.xlane.f32.xlu0 %v142
    %v144 = vpop.xlane.xlu0 %143
    %v145 = vsel %vm117, %v94, -inf
    %146 = vmax.xlane.f32.xlu0 %v145
    %v147 = vpop.xlane.xlu0 %146
    %v148 = vsel %vm117, %v95, -inf
    %149 = vmax.xlane.f32.xlu0 %v148
    %v150 = vpop.xlane.xlu0 %149
    %v151 = vsel %vm117, %v96, -inf
    %152 = vmax.xlane.f32.xlu0 %v151
    %v153 = vpop.xlane.xlu0 %152
    %v154 = vsel %vm117, %v97, -inf
    %155 = vmax.xlane.f32.xlu0 %v154
    %v156 = vpop.xlane.xlu0 %155
    %v157 = vsel %vm117, %v98, -inf
    %158 = vmax.xlane.f32.xlu0 %v157
    %v159 = vpop.xlane.xlu0 %158
    %v160 = vsel %vm117, %v99, -inf
    %161 = vmax.xlane.f32.xlu0 %v160
    %v162 = vpop.xlane.xlu0 %161
    %v163 = vsel %vm117, %v100, -inf
    %164 = vmax.xlane.f32.xlu0 %v163
    %v165 = vpop.xlane.xlu0 %164
    %v166 = vsel %vm117, %v101, -inf
    %167 = vmax.xlane.f32.xlu0 %v166
    %v168 = vpop.xlane.xlu0 %167
    %v169 = vsel %vm117, %v102, -inf
    %170 = vmax.xlane.f32.xlu0 %v169
    %v171 = vpop.xlane.xlu0 %170
    %v172 = vsel %vm117, %v103, -inf
    %173 = vmax.xlane.f32.xlu0 %v172
    %v174 = vpop.xlane.xlu0 %173
    %v175 = vsel %vm117, %v104, -inf
    %176 = vmax.xlane.f32.xlu0 %v175
    %v177 = vpop.xlane.xlu0 %176
    %v178 = vsel %vm117, %v105, -inf
    %179 = vmax.xlane.f32.xlu0 %v178
    %v180 = vpop.xlane.xlu0 %179
    %v181 = vsel %vm117, %v106, -inf
    %182 = vmax.xlane.f32.xlu0 %v181
    %v183 = vpop.xlane.xlu0 %182
    %v184 = vsel %vm117, %v107, -inf
    %185 = vmax.xlane.f32.xlu0 %v184
    %v186 = vpop.xlane.xlu0 %185
    %v187 = vsel %vm117, %v108, -inf
    %188 = vmax.xlane.f32.xlu0 %v187
    %v189 = vpop.xlane.xlu0 %188
    %v190 = vsel %vm117, %v109, -inf
    %191 = vmax.xlane.f32.xlu0 %v190
    %v192 = vpop.xlane.xlu0 %191
    %v193 = vsel %vm117, %v110, -inf
    %194 = vmax.xlane.f32.xlu0 %v193
    %v195 = vpop.xlane.xlu0 %194
    %v196 = vsel %vm117, %v111, -inf
    %197 = vmax.xlane.f32.xlu0 %v196
    %v198 = vpop.xlane.xlu0 %197
    %v199 = vsel %vm117, %v112, -inf
    %200 = vmax.xlane.f32.xlu0 %v199
    %v201 = vpop.xlane.xlu0 %200
    %v202 = vsel %vm117, %v113, -inf
    %203 = vmax.xlane.f32.xlu0 %v202
    %v204 = vpop.xlane.xlu0 %203
    %v205 = vsel %vm117, %v114, -inf
    %206 = vmax.xlane.f32.xlu0 %v205
    %v207 = vpop.xlane.xlu0 %206
    %v208 = vsel %vm117, %v115, -inf
    %209 = vmax.xlane.f32.xlu0 %v208
    %v210 = vpop.xlane.xlu0 %209
    %v211 = vsel %vm117, %v116, -inf
    %212 = vmax.xlane.f32.xlu0 %v211
    %v213 = vpop.xlane.xlu0 %212
    %v214 = vsub.f32 %v85, %v120
    %v215 = vsub.f32 %v86, %v123
    %v216 = vsub.f32 %v87, %v126
    %v217 = vsub.f32 %v88, %v129
    %v218 = vsub.f32 %v89, %v132
    %v219 = vsub.f32 %v90, %v135
    %v220 = vsub.f32 %v91, %v138
    %v221 = vsub.f32 %v92, %v141
    %v222 = vsub.f32 %v93, %v144
    %v223 = vsub.f32 %v94, %v147
    %v224 = vsub.f32 %v95, %v150
    %v225 = vsub.f32 %v96, %v153
    %v226 = vsub.f32 %v97, %v156
    %v227 = vsub.f32 %v98, %v159
    %v228 = vsub.f32 %v99, %v162
    %v229 = vsub.f32 %v100, %v165
    %v230 = vsub.f32 %v101, %v168
    %v231 = vsub.f32 %v102, %v171
    %v232 = vsub.f32 %v103, %v174
    %v233 = vsub.f32 %v104, %v177
    %v234 = vsub.f32 %v105, %v180
    %v235 = vsub.f32 %v106, %v183
    %v236 = vsub.f32 %v107, %v186
    %v237 = vsub.f32 %v108, %v189
    %v238 = vsub.f32 %v109, %v192
    %v239 = vsub.f32 %v110, %v195
    %v240 = vsub.f32 %v111, %v198
    %v241 = vsub.f32 %v112, %v201
    %v242 = vsub.f32 %v113, %v204
    %v243 = vsub.f32 %v114, %v207
    %v244 = vsub.f32 %v115, %v210
    %v245 = vsub.f32 %v116, %v213
    %v246 = vmul.f32 %v214, 1.442695
    %v247 = vpow.pop %v246
    %v248 = vmul.f32 %v215, 1.442695
    %v249 = vpow.pop %v248
    %v250 = vmul.f32 %v216, 1.442695
    %v251 = vpow.pop %v250
    %v252 = vmul.f32 %v217, 1.442695
    %v253 = vpow.pop %v252
    %v254 = vmul.f32 %v218, 1.442695
    %v255 = vpow.pop %v254
    %v256 = vmul.f32 %v219, 1.442695
    %v257 = vpow.pop %v256
    %v258 = vmul.f32 %v220, 1.442695
    %v259 = vpow.pop %v258
    %v260 = vmul.f32 %v221, 1.442695
    %v261 = vpow.pop %v260
    %v262 = vmul.f32 %v222, 1.442695
    %v263 = vpow.pop %v262
    %v264 = vmul.f32 %v223, 1.442695
    %v265 = vpow.pop %v264
    %v266 = vmul.f32 %v224, 1.442695
    %v267 = vpow.pop %v266
    %v268 = vmul.f32 %v225, 1.442695
    %v269 = vpow.pop %v268
    %v270 = vmul.f32 %v226, 1.442695
    %v271 = vpow.pop %v270
    %v272 = vmul.f32 %v227, 1.442695
    %v273 = vpow.pop %v272
    %v274 = vmul.f32 %v228, 1.442695
    %v275 = vpow.pop %v274
    %v276 = vmul.f32 %v229, 1.442695
    %v277 = vpow.pop %v276
    %v278 = vmul.f32 %v230, 1.442695
    %v279 = vpow.pop %v278
    %v280 = vmul.f32 %v231, 1.442695
    %v281 = vpow.pop %v280
    %v282 = vmul.f32 %v232, 1.442695
    %v283 = vpow.pop %v282
    %v284 = vmul.f32 %v233, 1.442695
    %v285 = vpow.pop %v284
    %v286 = vmul.f32 %v234, 1.442695
    %v287 = vpow.pop %v286
    %v288 = vmul.f32 %v235, 1.442695
    %v289 = vpow.pop %v288
    %v290 = vmul.f32 %v236, 1.442695
    %v291 = vpow.pop %v290
    %v292 = vmul.f32 %v237, 1.442695
    %v293 = vpow.pop %v292
    %v294 = vmul.f32 %v238, 1.442695
    %v295 = vpow.pop %v294
    %v296 = vmul.f32 %v239, 1.442695
    %v297 = vpow.pop %v296
    %v298 = vmul.f32 %v240, 1.442695
    %v299 = vpow.pop %v298
    %v300 = vmul.f32 %v241, 1.442695
    %v301 = vpow.pop %v300
    %v302 = vmul.f32 %v242, 1.442695
    %v303 = vpow.pop %v302
    %v304 = vmul.f32 %v243, 1.442695
    %v305 = vpow.pop %v304
    %v306 = vmul.f32 %v244, 1.442695
    %v307 = vpow.pop %v306
    %v308 = vmul.f32 %v245, 1.442695
    %v309 = vpow.pop %v308
    %v310 = vsel %vm117, %v247, 0.0
    %311 = vadd.xlane.f32.xlu0 %v310
    %v312 = vpop.xlane.xlu0 %311
    %v313 = vsel %vm117, %v249, 0.0
    %314 = vadd.xlane.f32.xlu0 %v313
    %v315 = vpop.xlane.xlu0 %314
    %v316 = vsel %vm117, %v251, 0.0
    %317 = vadd.xlane.f32.xlu0 %v316
    %v318 = vpop.xlane.xlu0 %317
    %v319 = vsel %vm117, %v253, 0.0
    %320 = vadd.xlane.f32.xlu0 %v319
    %v321 = vpop.xlane.xlu0 %320
    %v322 = vsel %vm117, %v255, 0.0
    %323 = vadd.xlane.f32.xlu0 %v322
    %v324 = vpop.xlane.xlu0 %323
    %v325 = vsel %vm117, %v257, 0.0
    %326 = vadd.xlane.f32.xlu0 %v325
    %v327 = vpop.xlane.xlu0 %326
    %v328 = vsel %vm117, %v259, 0.0
    %329 = vadd.xlane.f32.xlu0 %v328
    %v330 = vpop.xlane.xlu0 %329
    %v331 = vsel %vm117, %v261, 0.0
    %332 = vadd.xlane.f32.xlu0 %v331
    %v333 = vpop.xlane.xlu0 %332
    %v334 = vsel %vm117, %v263, 0.0
    %335 = vadd.xlane.f32.xlu0 %v334
    %v336 = vpop.xlane.xlu0 %335
    %v337 = vsel %vm117, %v265, 0.0
    %338 = vadd.xlane.f32.xlu0 %v337
    %v339 = vpop.xlane.xlu0 %338
    %v340 = vsel %vm117, %v267, 0.0
    %341 = vadd.xlane.f32.xlu0 %v340
    %v342 = vpop.xlane.xlu0 %341
    %v343 = vsel %vm117, %v269, 0.0
    %344 = vadd.xlane.f32.xlu0 %v343
    %v345 = vpop.xlane.xlu0 %344
    %v346 = vsel %vm117, %v271, 0.0
    %347 = vadd.xlane.f32.xlu0 %v346
    %v348 = vpop.xlane.xlu0 %347
    %v349 = vsel %vm117, %v273, 0.0
    %350 = vadd.xlane.f32.xlu0 %v349
    %v351 = vpop.xlane.xlu0 %350
    %v352 = vsel %vm117, %v275, 0.0
    %353 = vadd.xlane.f32.xlu0 %v352
    %v354 = vpop.xlane.xlu0 %353
    %v355 = vsel %vm117, %v277, 0.0
    %356 = vadd.xlane.f32.xlu0 %v355
    %v357 = vpop.xlane.xlu0 %356
    %v358 = vsel %vm117, %v279, 0.0
    %359 = vadd.xlane.f32.xlu0 %v358
    %v360 = vpop.xlane.xlu0 %359
    %v361 = vsel %vm117, %v281, 0.0
    %362 = vadd.xlane.f32.xlu0 %v361
    %v363 = vpop.xlane.xlu0 %362
    %v364 = vsel %vm117, %v283, 0.0
    %365 = vadd.xlane.f32.xlu0 %v364
    %v366 = vpop.xlane.xlu0 %365
    %v367 = vsel %vm117, %v285, 0.0
    %368 = vadd.xlane.f32.xlu0 %v367
    %v369 = vpop.xlane.xlu0 %368
    %v370 = vsel %vm117, %v287, 0.0
    %371 = vadd.xlane.f32.xlu0 %v370
    %v372 = vpop.xlane.xlu0 %371
    %v373 = vsel %vm117, %v289, 0.0
    %374 = vadd.xlane.f32.xlu0 %v373
    %v375 = vpop.xlane.xlu0 %374
    %v376 = vsel %vm117, %v291, 0.0
    %377 = vadd.xlane.f32.xlu0 %v376
    %v378 = vpop.xlane.xlu0 %377
    %v379 = vsel %vm117, %v293, 0.0
    %380 = vadd.xlane.f32.xlu0 %v379
    %v381 = vpop.xlane.xlu0 %380
    %v382 = vsel %vm117, %v295, 0.0
    %383 = vadd.xlane.f32.xlu0 %v382
    %v384 = vpop.xlane.xlu0 %383
    %v385 = vsel %vm117, %v297, 0.0
    %386 = vadd.xlane.f32.xlu0 %v385
    %v387 = vpop.xlane.xlu0 %386
    %v388 = vsel %vm117, %v299, 0.0
    %389 = vadd.xlane.f32.xlu0 %v388
    %v390 = vpop.xlane.xlu0 %389
    %v391 = vsel %vm117, %v301, 0.0
    %392 = vadd.xlane.f32.xlu0 %v391
    %v393 = vpop.xlane.xlu0 %392
    %v394 = vsel %vm117, %v303, 0.0
    %395 = vadd.xlane.f32.xlu0 %v394
    %v396 = vpop.xlane.xlu0 %395
    %v397 = vsel %vm117, %v305, 0.0
    %398 = vadd.xlane.f32.xlu0 %v397
    %v399 = vpop.xlane.xlu0 %398
    %v400 = vsel %vm117, %v307, 0.0
    %401 = vadd.xlane.f32.xlu0 %v400
    %v402 = vpop.xlane.xlu0 %401
    %v403 = vsel %vm117, %v309, 0.0
    %404 = vadd.xlane.f32.xlu0 %v403
    %v405 = vpop.xlane.xlu0 %404
    %v406 = vrcp.pop %v312
    %v407 = vmul.f32 %v312, %v406
    %v408 = vsub.f32 1.0, %v407
    %v409 = vmul.f32 %v406, %v408
    %v410 = vadd.f32 %v406, %v409
    %vm411 = vweird.f32 %v312
    %vm412 = vweird.f32 %v406
    %vm413 = vmor %vm411, %vm412
    %v414 = vsel %vm413, %v406, %v410
    %v415 = vand.u32 2147483647, %v312
    %vm416 = vcmp.eq.f32.partialorder %v415, 8.507059e+37
    %v417 = vand.u32 %v312, 2147483648
    %v418 = vor.u32 1.1754944e-38, %v417
    %v419 = vsel %vm416, %v418, %v414
    %v420 = vmul.f32 %v247, %v419
    %v421 = vrcp.pop %v315
    %v422 = vmul.f32 %v315, %v421
    %v423 = vsub.f32 1.0, %v422
    %v424 = vmul.f32 %v421, %v423
    %v425 = vadd.f32 %v421, %v424
    %vm426 = vweird.f32 %v315
    %vm427 = vweird.f32 %v421
    %vm428 = vmor %vm426, %vm427
    %v429 = vsel %vm428, %v421, %v425
    %v430 = vand.u32 2147483647, %v315
    %vm431 = vcmp.eq.f32.partialorder %v430, 8.507059e+37
    %v432 = vand.u32 %v315, 2147483648
    %v433 = vor.u32 1.1754944e-38, %v432
    %v434 = vsel %vm431, %v433, %v429
    %v435 = vmul.f32 %v249, %v434
    %v436 = vrcp.pop %v318
    %v437 = vmul.f32 %v318, %v436
    %v438 = vsub.f32 1.0, %v437
    %v439 = vmul.f32 %v436, %v438
    %v440 = vadd.f32 %v436, %v439
    %vm441 = vweird.f32 %v318
    %vm442 = vweird.f32 %v436
    %vm443 = vmor %vm441, %vm442
    %v444 = vsel %vm443, %v436, %v440
    %v445 = vand.u32 2147483647, %v318
    %vm446 = vcmp.eq.f32.partialorder %v445, 8.507059e+37
    %v447 = vand.u32 %v318, 2147483648
    %v448 = vor.u32 1.1754944e-38, %v447
    %v449 = vsel %vm446, %v448, %v444
    %v450 = vmul.f32 %v251, %v449
    %v451 = vrcp.pop %v321
    %v452 = vmul.f32 %v321, %v451
    %v453 = vsub.f32 1.0, %v452
    %v454 = vmul.f32 %v451, %v453
    %v455 = vadd.f32 %v451, %v454
    %vm456 = vweird.f32 %v321
    %vm457 = vweird.f32 %v451
    %vm458 = vmor %vm456, %vm457
    %v459 = vsel %vm458, %v451, %v455
    %v460 = vand.u32 2147483647, %v321
    %vm461 = vcmp.eq.f32.partialorder %v460, 8.507059e+37
    %v462 = vand.u32 %v321, 2147483648
    %v463 = vor.u32 1.1754944e-38, %v462
    %v464 = vsel %vm461, %v463, %v459
    %v465 = vmul.f32 %v253, %v464
    %v466 = vrcp.pop %v324
    %v467 = vmul.f32 %v324, %v466
    %v468 = vsub.f32 1.0, %v467
    %v469 = vmul.f32 %v466, %v468
    %v470 = vadd.f32 %v466, %v469
    %vm471 = vweird.f32 %v324
    %vm472 = vweird.f32 %v466
    %vm473 = vmor %vm471, %vm472
    %v474 = vsel %vm473, %v466, %v470
    %v475 = vand.u32 2147483647, %v324
    %vm476 = vcmp.eq.f32.partialorder %v475, 8.507059e+37
    %v477 = vand.u32 %v324, 2147483648
    %v478 = vor.u32 1.1754944e-38, %v477
    %v479 = vsel %vm476, %v478, %v474
    %v480 = vmul.f32 %v255, %v479
    %v481 = vrcp.pop %v327
    %v482 = vmul.f32 %v327, %v481
    %v483 = vsub.f32 1.0, %v482
    %v484 = vmul.f32 %v481, %v483
    %v485 = vadd.f32 %v481, %v484
    %vm486 = vweird.f32 %v327
    %vm487 = vweird.f32 %v481
    %vm488 = vmor %vm486, %vm487
    %v489 = vsel %vm488, %v481, %v485
    %v490 = vand.u32 2147483647, %v327
    %vm491 = vcmp.eq.f32.partialorder %v490, 8.507059e+37
    %v492 = vand.u32 %v327, 2147483648
    %v493 = vor.u32 1.1754944e-38, %v492
    %v494 = vsel %vm491, %v493, %v489
    %v495 = vmul.f32 %v257, %v494
    %v496 = vrcp.pop %v330
    %v497 = vmul.f32 %v330, %v496
    %v498 = vsub.f32 1.0, %v497
    %v499 = vmul.f32 %v496, %v498
    %v500 = vadd.f32 %v496, %v499
    %vm501 = vweird.f32 %v330
    %vm502 = vweird.f32 %v496
    %vm503 = vmor %vm501, %vm502
    %v504 = vsel %vm503, %v496, %v500
    %v505 = vand.u32 2147483647, %v330
    %vm506 = vcmp.eq.f32.partialorder %v505, 8.507059e+37
    %v507 = vand.u32 %v330, 2147483648
    %v508 = vor.u32 1.1754944e-38, %v507
    %v509 = vsel %vm506, %v508, %v504
    %v510 = vmul.f32 %v259, %v509
    %v511 = vrcp.pop %v333
    %v512 = vmul.f32 %v333, %v511
    %v513 = vsub.f32 1.0, %v512
    %v514 = vmul.f32 %v511, %v513
    %v515 = vadd.f32 %v511, %v514
    %vm516 = vweird.f32 %v333
    %vm517 = vweird.f32 %v511
    %vm518 = vmor %vm516, %vm517
    %v519 = vsel %vm518, %v511, %v515
    %v520 = vand.u32 2147483647, %v333
    %vm521 = vcmp.eq.f32.partialorder %v520, 8.507059e+37
    %v522 = vand.u32 %v333, 2147483648
    %v523 = vor.u32 1.1754944e-38, %v522
    %v524 = vsel %vm521, %v523, %v519
    %v525 = vmul.f32 %v261, %v524
    %v526 = vrcp.pop %v336
    %v527 = vmul.f32 %v336, %v526
    %v528 = vsub.f32 1.0, %v527
    %v529 = vmul.f32 %v526, %v528
    %v530 = vadd.f32 %v526, %v529
    %vm531 = vweird.f32 %v336
    %vm532 = vweird.f32 %v526
    %vm533 = vmor %vm531, %vm532
    %v534 = vsel %vm533, %v526, %v530
    %v535 = vand.u32 2147483647, %v336
    %vm536 = vcmp.eq.f32.partialorder %v535, 8.507059e+37
    %v537 = vand.u32 %v336, 2147483648
    %v538 = vor.u32 1.1754944e-38, %v537
    %v539 = vsel %vm536, %v538, %v534
    %v540 = vmul.f32 %v263, %v539
    %v541 = vrcp.pop %v339
    %v542 = vmul.f32 %v339, %v541
    %v543 = vsub.f32 1.0, %v542
    %v544 = vmul.f32 %v541, %v543
    %v545 = vadd.f32 %v541, %v544
    %vm546 = vweird.f32 %v339
    %vm547 = vweird.f32 %v541
    %vm548 = vmor %vm546, %vm547
    %v549 = vsel %vm548, %v541, %v545
    %v550 = vand.u32 2147483647, %v339
    %vm551 = vcmp.eq.f32.partialorder %v550, 8.507059e+37
    %v552 = vand.u32 %v339, 2147483648
    %v553 = vor.u32 1.1754944e-38, %v552
    %v554 = vsel %vm551, %v553, %v549
    %v555 = vmul.f32 %v265, %v554
    %v556 = vrcp.pop %v342
    %v557 = vmul.f32 %v342, %v556
    %v558 = vsub.f32 1.0, %v557
    %v559 = vmul.f32 %v556, %v558
    %v560 = vadd.f32 %v556, %v559
    %vm561 = vweird.f32 %v342
    %vm562 = vweird.f32 %v556
    %vm563 = vmor %vm561, %vm562
    %v564 = vsel %vm563, %v556, %v560
    %v565 = vand.u32 2147483647, %v342
    %vm566 = vcmp.eq.f32.partialorder %v565, 8.507059e+37
    %v567 = vand.u32 %v342, 2147483648
    %v568 = vor.u32 1.1754944e-38, %v567
    %v569 = vsel %vm566, %v568, %v564
    %v570 = vmul.f32 %v267, %v569
    %v571 = vrcp.pop %v345
    %v572 = vmul.f32 %v345, %v571
    %v573 = vsub.f32 1.0, %v572
    %v574 = vmul.f32 %v571, %v573
    %v575 = vadd.f32 %v571, %v574
    %vm576 = vweird.f32 %v345
    %vm577 = vweird.f32 %v571
    %vm578 = vmor %vm576, %vm577
    %v579 = vsel %vm578, %v571, %v575
    %v580 = vand.u32 2147483647, %v345
    %vm581 = vcmp.eq.f32.partialorder %v580, 8.507059e+37
    %v582 = vand.u32 %v345, 2147483648
    %v583 = vor.u32 1.1754944e-38, %v582
    %v584 = vsel %vm581, %v583, %v579
    %v585 = vmul.f32 %v269, %v584
    %v586 = vrcp.pop %v348
    %v587 = vmul.f32 %v348, %v586
    %v588 = vsub.f32 1.0, %v587
    %v589 = vmul.f32 %v586, %v588
    %v590 = vadd.f32 %v586, %v589
    %vm591 = vweird.f32 %v348
    %vm592 = vweird.f32 %v586
    %vm593 = vmor %vm591, %vm592
    %v594 = vsel %vm593, %v586, %v590
    %v595 = vand.u32 2147483647, %v348
    %vm596 = vcmp.eq.f32.partialorder %v595, 8.507059e+37
    %v597 = vand.u32 %v348, 2147483648
    %v598 = vor.u32 1.1754944e-38, %v597
    %v599 = vsel %vm596, %v598, %v594
    %v600 = vmul.f32 %v271, %v599
    %v601 = vrcp.pop %v351
    %v602 = vmul.f32 %v351, %v601
    %v603 = vsub.f32 1.0, %v602
    %v604 = vmul.f32 %v601, %v603
    %v605 = vadd.f32 %v601, %v604
    %vm606 = vweird.f32 %v351
    %vm607 = vweird.f32 %v601
    %vm608 = vmor %vm606, %vm607
    %v609 = vsel %vm608, %v601, %v605
    %v610 = vand.u32 2147483647, %v351
    %vm611 = vcmp.eq.f32.partialorder %v610, 8.507059e+37
    %v612 = vand.u32 %v351, 2147483648
    %v613 = vor.u32 1.1754944e-38, %v612
    %v614 = vsel %vm611, %v613, %v609
    %v615 = vmul.f32 %v273, %v614
    %v616 = vrcp.pop %v354
    %v617 = vmul.f32 %v354, %v616
    %v618 = vsub.f32 1.0, %v617
    %v619 = vmul.f32 %v616, %v618
    %v620 = vadd.f32 %v616, %v619
    %vm621 = vweird.f32 %v354
    %vm622 = vweird.f32 %v616
    %vm623 = vmor %vm621, %vm622
    %v624 = vsel %vm623, %v616, %v620
    %v625 = vand.u32 2147483647, %v354
    %vm626 = vcmp.eq.f32.partialorder %v625, 8.507059e+37
    %v627 = vand.u32 %v354, 2147483648
    %v628 = vor.u32 1.1754944e-38, %v627
    %v629 = vsel %vm626, %v628, %v624
    %v630 = vmul.f32 %v275, %v629
    %v631 = vrcp.pop %v357
    %v632 = vmul.f32 %v357, %v631
    %v633 = vsub.f32 1.0, %v632
    %v634 = vmul.f32 %v631, %v633
    %v635 = vadd.f32 %v631, %v634
    %vm636 = vweird.f32 %v357
    %vm637 = vweird.f32 %v631
    %vm638 = vmor %vm636, %vm637
    %v639 = vsel %vm638, %v631, %v635
    %v640 = vand.u32 2147483647, %v357
    %vm641 = vcmp.eq.f32.partialorder %v640, 8.507059e+37
    %v642 = vand.u32 %v357, 2147483648
    %v643 = vor.u32 1.1754944e-38, %v642
    %v644 = vsel %vm641, %v643, %v639
    %v645 = vmul.f32 %v277, %v644
    %v646 = vrcp.pop %v360
    %v647 = vmul.f32 %v360, %v646
    %v648 = vsub.f32 1.0, %v647
    %v649 = vmul.f32 %v646, %v648
    %v650 = vadd.f32 %v646, %v649
    %vm651 = vweird.f32 %v360
    %vm652 = vweird.f32 %v646
    %vm653 = vmor %vm651, %vm652
    %v654 = vsel %vm653, %v646, %v650
    %v655 = vand.u32 2147483647, %v360
    %vm656 = vcmp.eq.f32.partialorder %v655, 8.507059e+37
    %v657 = vand.u32 %v360, 2147483648
    %v658 = vor.u32 1.1754944e-38, %v657
    %v659 = vsel %vm656, %v658, %v654
    %v660 = vmul.f32 %v279, %v659
    %v661 = vrcp.pop %v363
    %v662 = vmul.f32 %v363, %v661
    %v663 = vsub.f32 1.0, %v662
    %v664 = vmul.f32 %v661, %v663
    %v665 = vadd.f32 %v661, %v664
    %vm666 = vweird.f32 %v363
    %vm667 = vweird.f32 %v661
    %vm668 = vmor %vm666, %vm667
    %v669 = vsel %vm668, %v661, %v665
    %v670 = vand.u32 2147483647, %v363
    %vm671 = vcmp.eq.f32.partialorder %v670, 8.507059e+37
    %v672 = vand.u32 %v363, 2147483648
    %v673 = vor.u32 1.1754944e-38, %v672
    %v674 = vsel %vm671, %v673, %v669
    %v675 = vmul.f32 %v281, %v674
    %v676 = vrcp.pop %v366
    %v677 = vmul.f32 %v366, %v676
    %v678 = vsub.f32 1.0, %v677
    %v679 = vmul.f32 %v676, %v678
    %v680 = vadd.f32 %v676, %v679
    %vm681 = vweird.f32 %v366
    %vm682 = vweird.f32 %v676
    %vm683 = vmor %vm681, %vm682
    %v684 = vsel %vm683, %v676, %v680
    %v685 = vand.u32 2147483647, %v366
    %vm686 = vcmp.eq.f32.partialorder %v685, 8.507059e+37
    %v687 = vand.u32 %v366, 2147483648
    %v688 = vor.u32 1.1754944e-38, %v687
    %v689 = vsel %vm686, %v688, %v684
    %v690 = vmul.f32 %v283, %v689
    %v691 = vrcp.pop %v369
    %v692 = vmul.f32 %v369, %v691
    %v693 = vsub.f32 1.0, %v692
    %v694 = vmul.f32 %v691, %v693
    %v695 = vadd.f32 %v691, %v694
    %vm696 = vweird.f32 %v369
    %vm697 = vweird.f32 %v691
    %vm698 = vmor %vm696, %vm697
    %v699 = vsel %vm698, %v691, %v695
    %v700 = vand.u32 2147483647, %v369
    %vm701 = vcmp.eq.f32.partialorder %v700, 8.507059e+37
    %v702 = vand.u32 %v369, 2147483648
    %v703 = vor.u32 1.1754944e-38, %v702
    %v704 = vsel %vm701, %v703, %v699
    %v705 = vmul.f32 %v285, %v704
    %v706 = vrcp.pop %v372
    %v707 = vmul.f32 %v372, %v706
    %v708 = vsub.f32 1.0, %v707
    %v709 = vmul.f32 %v706, %v708
    %v710 = vadd.f32 %v706, %v709
    %vm711 = vweird.f32 %v372
    %vm712 = vweird.f32 %v706
    %vm713 = vmor %vm711, %vm712
    %v714 = vsel %vm713, %v706, %v710
    %v715 = vand.u32 2147483647, %v372
    %vm716 = vcmp.eq.f32.partialorder %v715, 8.507059e+37
    %v717 = vand.u32 %v372, 2147483648
    %v718 = vor.u32 1.1754944e-38, %v717
    %v719 = vsel %vm716, %v718, %v714
    %v720 = vmul.f32 %v287, %v719
    %v721 = vrcp.pop %v375
    %v722 = vmul.f32 %v375, %v721
    %v723 = vsub.f32 1.0, %v722
    %v724 = vmul.f32 %v721, %v723
    %v725 = vadd.f32 %v721, %v724
    %vm726 = vweird.f32 %v375
    %vm727 = vweird.f32 %v721
    %vm728 = vmor %vm726, %vm727
    %v729 = vsel %vm728, %v721, %v725
    %v730 = vand.u32 2147483647, %v375
    %vm731 = vcmp.eq.f32.partialorder %v730, 8.507059e+37
    %v732 = vand.u32 %v375, 2147483648
    %v733 = vor.u32 1.1754944e-38, %v732
    %v734 = vsel %vm731, %v733, %v729
    %v735 = vmul.f32 %v289, %v734
    %v736 = vrcp.pop %v378
    %v737 = vmul.f32 %v378, %v736
    %v738 = vsub.f32 1.0, %v737
    %v739 = vmul.f32 %v736, %v738
    %v740 = vadd.f32 %v736, %v739
    %vm741 = vweird.f32 %v378
    %vm742 = vweird.f32 %v736
    %vm743 = vmor %vm741, %vm742
    %v744 = vsel %vm743, %v736, %v740
    %v745 = vand.u32 2147483647, %v378
    %vm746 = vcmp.eq.f32.partialorder %v745, 8.507059e+37
    %v747 = vand.u32 %v378, 2147483648
    %v748 = vor.u32 1.1754944e-38, %v747
    %v749 = vsel %vm746, %v748, %v744
    %v750 = vmul.f32 %v291, %v749
    %v751 = vrcp.pop %v381
    %v752 = vmul.f32 %v381, %v751
    %v753 = vsub.f32 1.0, %v752
    %v754 = vmul.f32 %v751, %v753
    %v755 = vadd.f32 %v751, %v754
    %vm756 = vweird.f32 %v381
    %vm757 = vweird.f32 %v751
    %vm758 = vmor %vm756, %vm757
    %v759 = vsel %vm758, %v751, %v755
    %v760 = vand.u32 2147483647, %v381
    %vm761 = vcmp.eq.f32.partialorder %v760, 8.507059e+37
    %v762 = vand.u32 %v381, 2147483648
    %v763 = vor.u32 1.1754944e-38, %v762
    %v764 = vsel %vm761, %v763, %v759
    %v765 = vmul.f32 %v293, %v764
    %v766 = vrcp.pop %v384
    %v767 = vmul.f32 %v384, %v766
    %v768 = vsub.f32 1.0, %v767
    %v769 = vmul.f32 %v766, %v768
    %v770 = vadd.f32 %v766, %v769
    %vm771 = vweird.f32 %v384
    %vm772 = vweird.f32 %v766
    %vm773 = vmor %vm771, %vm772
    %v774 = vsel %vm773, %v766, %v770
    %v775 = vand.u32 2147483647, %v384
    %vm776 = vcmp.eq.f32.partialorder %v775, 8.507059e+37
    %v777 = vand.u32 %v384, 2147483648
    %v778 = vor.u32 1.1754944e-38, %v777
    %v779 = vsel %vm776, %v778, %v774
    %v780 = vmul.f32 %v295, %v779
    %v781 = vrcp.pop %v387
    %v782 = vmul.f32 %v387, %v781
    %v783 = vsub.f32 1.0, %v782
    %v784 = vmul.f32 %v781, %v783
    %v785 = vadd.f32 %v781, %v784
    %vm786 = vweird.f32 %v387
    %vm787 = vweird.f32 %v781
    %vm788 = vmor %vm786, %vm787
    %v789 = vsel %vm788, %v781, %v785
    %v790 = vand.u32 2147483647, %v387
    %vm791 = vcmp.eq.f32.partialorder %v790, 8.507059e+37
    %v792 = vand.u32 %v387, 2147483648
    %v793 = vor.u32 1.1754944e-38, %v792
    %v794 = vsel %vm791, %v793, %v789
    %v795 = vmul.f32 %v297, %v794
    %v796 = vrcp.pop %v390
    %v797 = vmul.f32 %v390, %v796
    %v798 = vsub.f32 1.0, %v797
    %v799 = vmul.f32 %v796, %v798
    %v800 = vadd.f32 %v796, %v799
    %vm801 = vweird.f32 %v390
    %vm802 = vweird.f32 %v796
    %vm803 = vmor %vm801, %vm802
    %v804 = vsel %vm803, %v796, %v800
    %v805 = vand.u32 2147483647, %v390
    %vm806 = vcmp.eq.f32.partialorder %v805, 8.507059e+37
    %v807 = vand.u32 %v390, 2147483648
    %v808 = vor.u32 1.1754944e-38, %v807
    %v809 = vsel %vm806, %v808, %v804
    %v810 = vmul.f32 %v299, %v809
    %v811 = vrcp.pop %v393
    %v812 = vmul.f32 %v393, %v811
    %v813 = vsub.f32 1.0, %v812
    %v814 = vmul.f32 %v811, %v813
    %v815 = vadd.f32 %v811, %v814
    %vm816 = vweird.f32 %v393
    %vm817 = vweird.f32 %v811
    %vm818 = vmor %vm816, %vm817
    %v819 = vsel %vm818, %v811, %v815
    %v820 = vand.u32 2147483647, %v393
    %vm821 = vcmp.eq.f32.partialorder %v820, 8.507059e+37
    %v822 = vand.u32 %v393, 2147483648
    %v823 = vor.u32 1.1754944e-38, %v822
    %v824 = vsel %vm821, %v823, %v819
    %v825 = vmul.f32 %v301, %v824
    %v826 = vrcp.pop %v396
    %v827 = vmul.f32 %v396, %v826
    %v828 = vsub.f32 1.0, %v827
    %v829 = vmul.f32 %v826, %v828
    %v830 = vadd.f32 %v826, %v829
    %vm831 = vweird.f32 %v396
    %vm832 = vweird.f32 %v826
    %vm833 = vmor %vm831, %vm832
    %v834 = vsel %vm833, %v826, %v830
    %v835 = vand.u32 2147483647, %v396
    %vm836 = vcmp.eq.f32.partialorder %v835, 8.507059e+37
    %v837 = vand.u32 %v396, 2147483648
    %v838 = vor.u32 1.1754944e-38, %v837
    %v839 = vsel %vm836, %v838, %v834
    %v840 = vmul.f32 %v303, %v839
    %v841 = vrcp.pop %v399
    %v842 = vmul.f32 %v399, %v841
    %v843 = vsub.f32 1.0, %v842
    %v844 = vmul.f32 %v841, %v843
    %v845 = vadd.f32 %v841, %v844
    %vm846 = vweird.f32 %v399
    %vm847 = vweird.f32 %v841
    %vm848 = vmor %vm846, %vm847
    %v849 = vsel %vm848, %v841, %v845
    %v850 = vand.u32 2147483647, %v399
    %vm851 = vcmp.eq.f32.partialorder %v850, 8.507059e+37
    %v852 = vand.u32 %v399, 2147483648
    %v853 = vor.u32 1.1754944e-38, %v852
    %v854 = vsel %vm851, %v853, %v849
    %v855 = vmul.f32 %v305, %v854
    %v856 = vrcp.pop %v402
    %v857 = vmul.f32 %v402, %v856
    %v858 = vsub.f32 1.0, %v857
    %v859 = vmul.f32 %v856, %v858
    %v860 = vadd.f32 %v856, %v859
    %vm861 = vweird.f32 %v402
    %vm862 = vweird.f32 %v856
    %vm863 = vmor %vm861, %vm862
    %v864 = vsel %vm863, %v856, %v860
    %v865 = vand.u32 2147483647, %v402
    %vm866 = vcmp.eq.f32.partialorder %v865, 8.507059e+37
    %v867 = vand.u32 %v402, 2147483648
    %v868 = vor.u32 1.1754944e-38, %v867
    %v869 = vsel %vm866, %v868, %v864
    %v870 = vmul.f32 %v307, %v869
    %v871 = vrcp.pop %v405
    %v872 = vmul.f32 %v405, %v871
    %v873 = vsub.f32 1.0, %v872
    %v874 = vmul.f32 %v871, %v873
    %v875 = vadd.f32 %v871, %v874
    %vm876 = vweird.f32 %v405
    %vm877 = vweird.f32 %v871
    %vm878 = vmor %vm876, %vm877
    %v879 = vsel %vm878, %v871, %v875
    %v880 = vand.u32 2147483647, %v405
    %vm881 = vcmp.eq.f32.partialorder %v880, 8.507059e+37
    %v882 = vand.u32 %v405, 2147483648
    %v883 = vor.u32 1.1754944e-38, %v882
    %v884 = vsel %vm881, %v883, %v879
    %v885 = vmul.f32 %v309, %v884
    %v886 = vld [vmem:[%s2] sm:$0xff]
    %v887 = vld [vmem:[%s2 + $0x8] sm:$0xff]
    %v889 = vsel %vm117, %v886, 0
    %v892 = vsel %vm117, %v887, 0
    %v895 = vsel %vm117, %v420, 0
    %v898 = vsel %vm117, %v435, 0
    %v901 = vsel %vm117, %v450, 0
    %v904 = vsel %vm117, %v465, 0
    %v907 = vsel %vm117, %v480, 0
    %v910 = vsel %vm117, %v495, 0
    %v913 = vsel %vm117, %v510, 0
    %v916 = vsel %vm117, %v525, 0
    %v919 = vsel %vm117, %v540, 0
    %v922 = vsel %vm117, %v555, 0
    %v925 = vsel %vm117, %v570, 0
    %v928 = vsel %vm117, %v585, 0
    %v931 = vsel %vm117, %v600, 0
    %v934 = vsel %vm117, %v615, 0
    %v937 = vsel %vm117, %v630, 0
    %v940 = vsel %vm117, %v645, 0
    %v943 = vsel %vm117, %v660, 0
    %v946 = vsel %vm117, %v675, 0
    %v949 = vsel %vm117, %v690, 0
    %v952 = vsel %vm117, %v705, 0
    %v955 = vsel %vm117, %v720, 0
    %v958 = vsel %vm117, %v735, 0
    %v961 = vsel %vm117, %v750, 0
    %v964 = vsel %vm117, %v765, 0
    %v967 = vsel %vm117, %v780, 0
    %v970 = vsel %vm117, %v795, 0
    %v973 = vsel %vm117, %v810, 0
    %v976 = vsel %vm117, %v825, 0
    %v979 = vsel %vm117, %v840, 0
    %v982 = vsel %vm117, %v855, 0
    %v985 = vsel %vm117, %v870, 0
    %v988 = vsel %vm117, %v885, 0
    %990 = vmatpush.xpose.msra.mxu0 %v940
    %991 = vmatpush.xpose.msra.mxu0 %v937
    %992 = vmatpush.xpose.msra.mxu0 %v934
    %993 = vmatpush.xpose.msra.mxu0 %v931
    %994 = vmatpush.xpose.msra.mxu0 %v928
    %995 = vmatpush.xpose.msra.mxu0 %v925
    %996 = vmatpush.xpose.msra.mxu0 %v922
    %997 = vmatpush.xpose.msra.mxu0 %v919
    %998 = vmatpush.xpose.msra.mxu0 %v916
    %999 = vmatpush.xpose.msra.mxu0 %v913
    %1000 = vmatpush.xpose.msra.mxu0 %v910
    %1001 = vmatpush.xpose.msra.mxu0 %v907
    %1002 = vmatpush.xpose.msra.mxu0 %v904
    %1003 = vmatpush.xpose.msra.mxu0 %v901
    %1004 = vmatpush.xpose.msra.mxu0 %v898
    %1005 = vmatpush.xpose.msra.mxu0 %v895
    %1006 = vmatmul.f32.gmra.mxu0 %v889
    %v1007 = vpop.f32.mrf.mxu0
    %v1008 = vadd.f32 0.0, %v1007
    %1009 = vmatmul.f32.gmra.mxu0 %v892
    %v1010 = vpop.f32.mrf.mxu0
    %v1011 = vadd.f32 0.0, %v1010
    %1012 = vdwg.mxu0
    %1013 = vmatpush.xpose.msra.mxu0 %v988
    %1014 = vmatpush.xpose.msra.mxu0 %v985
    %1015 = vmatpush.xpose.msra.mxu0 %v982
    %1016 = vmatpush.xpose.msra.mxu0 %v979
    %1017 = vmatpush.xpose.msra.mxu0 %v976
    %1018 = vmatpush.xpose.msra.mxu0 %v973
    %1019 = vmatpush.xpose.msra.mxu0 %v970
    %1020 = vmatpush.xpose.msra.mxu0 %v967
    %1021 = vmatpush.xpose.msra.mxu0 %v964
    %1022 = vmatpush.xpose.msra.mxu0 %v961
    %1023 = vmatpush.xpose.msra.mxu0 %v958
    %1024 = vmatpush.xpose.msra.mxu0 %v955
    %1025 = vmatpush.xpose.msra.mxu0 %v952
    %1026 = vmatpush.xpose.msra.mxu0 %v949
    %1027 = vmatpush.xpose.msra.mxu0 %v946
    %1028 = vmatpush.xpose.msra.mxu0 %v943
    %1029 = vmatmul.f32.gmra.mxu0 %v889
    %v1030 = vpop.f32.mrf.mxu0
    %v1031 = vadd.f32 0.0, %v1030
    %1032 = vmatmul.f32.gmra.mxu0 %v892
    %v1033 = vpop.f32.mrf.mxu0
    %v1034 = vadd.f32 0.0, %v1033
    %1035 = vdwg.mxu0
    %v1036 = vld [vmem:[%s71] sm:$0x3]
    %v1037 = vlaneseq
    %v1038 = vshrl.u32 %v1037, 7
    %v1039 = vadd.s32 %v1038, 8
    %v1040 = vperm.slane %v1036, 0
    %v1041 = vperm.slane %v1036, 1
    %vm1042 = vcmp.eq.s32.totalorder %v1038, %v1040
    %vm1043 = vcmp.eq.s32.totalorder %v1038, %v1041
    %vm1044 = vcmp.eq.s32.totalorder %v1039, %v1040
    %vm1045 = vcmp.eq.s32.totalorder %v1039, %v1041
    %v1046 = vsel %vm1042, %v1008, 0.0
    %v1047 = vsel %vm1043, %v1031, 0.0
    %v1048 = vsel %vm1044, %v1011, 0.0
    %v1049 = vsel %vm1045, %v1034, 0.0
    %v1050 = vadd.f32 %v1046, %v1048
    %v1051 = vrot.slane %v1050, 4
    %v1052 = vadd.f32 %v1050, %v1051
    %v1053 = vrot.slane %v1052, 2
    %v1054 = vadd.f32 %v1052, %v1053
    %v1055 = vrot.slane %v1054, 1
    %v1056 = vadd.f32 %v1054, %v1055
    %v1057 = vadd.f32 %v1047, %v1049
    %v1058 = vrot.slane %v1057, 4
    %v1059 = vadd.f32 %v1057, %v1058
    %v1060 = vrot.slane %v1059, 2
    %v1061 = vadd.f32 %v1059, %v1060
    %v1062 = vrot.slane %v1061, 1
    %v1063 = vadd.f32 %v1061, %v1062
    %v1064 = vadd.f32 %v1056, 1e-05
    %v1065 = vadd.f32 %v1063, 1e-05
    %v1066 = vlog2.pop %v1064
    %v1067 = vmul.f32 %v1066, 0.6931472
    %v1068 = vlog2.pop %v1065
    %v1069 = vmul.f32 %v1068, 0.6931472
    %v1070 = vsub.f32 0.0, %v1067
    %v1071 = vsub.f32 0.0, %v1069
    %s1072 = sadd.s32 0, 0
    %s1073 = smul.u32 %s1072, 256
    %v1074 = vlaneseq
    %v1075 = vand.u32 %v1074, 127
    %v1076 = vadd.s32 %v1075, 128
    %v1077 = vstv %s1073
    %v1078 = vadd.s32 %v1077, %v1075
    %v1079 = vadd.s32 %v1077, %v1076
    %v1080 = vld [vmem:[#allocation2] sm:$0x3]
    %vm1081 = vcmp.lt.s32.totalorder %v1078, 256
    %vm1082 = vcmp.lt.s32.totalorder %v1079, 256
    %v1083 = vsel %vm1081, %v1070, 0.0
    %v1084 = vsel %vm1082, %v1071, 0.0
    %v1087 = vrot.slane %v1084, 7
    %vm1088 = vcmask 1040384
    %v1089 = vsel %vm1088, %v1083, %v1087
    %v1091 = vadd.f32 %v1080, %v1089
    %v1092 = vlaneseq
    %vm1093 = vcmp.ge.s32.totalorder %v1092, 0
    %vm1094 = vcmp.lt.s32.totalorder %v1092, 256
    %vm1095 = vmand %vm1093, %vm1094
    %1096 = vst.msk [vmem:[#allocation2] sm:$0x3] %vm1095, %v1091
    // Predicated region
    $region18: #{tpu_custom_call.1} parent=1 // pred_check
      %p1097 = pneg %p76
    $region19: #{tpu_custom_call.1} parent=1 // pred_check_branch
      %1099 = sbr.rel (%p1097) target = $region21
    $region20: #{tpu_custom_call.1} parent=1 // pred_region
      %v1100 = vld [vmem:[#allocation2] sm:$0x3]
      %v1102 = vperm.slane %v1100, 0
      %v1103 = vperm.slane %v1100, 1
      %v1106 = vsel %vm1088, %v1102, 0.0
      %v1107 = vsel %vm1088, %v1103, 0.0
      %v1108 = vadd.f32 %v1106, %v1107
      %1109 = vadd.xlane.f32.xlu0 %v1108
      %v1110 = vpop.xlane.xlu0 %1109
      %v1111 = vrot.slane %v1110, 4
      %v1112 = vadd.f32 %v1110, %v1111
      %v1113 = vrot.slane %v1112, 2
      %v1114 = vadd.f32 %v1112, %v1113
      %v1115 = vrot.slane %v1114, 1
      %v1116 = vadd.f32 %v1114, %v1115
      %s1117 = vtos %v1116
      %v1118 = vstv %s1117
      %1119 = vst [vmem:[#allocation3] sm:$0x1] %v1118
    $region21: #{tpu_custom_call.1} parent=1 // pred_fallthru
      _
    // Predicated region
    $region22: #{tpu_custom_call.1} parent=1 // pred_check
      _
    $region23: #{tpu_custom_call.1} parent=1 // pred_check_branch
      %1121 = sbr.rel (0) target = $region25
    $region24: #{tpu_custom_call.1} parent=1 // pred_region
      %1123 = vsyncadd [#allocation4], 0
      %s1125 = sshll.u32 [#allocation3], 4
      %s1126 = int_to_ptr.vmem [resolvable:$true] %s1125
      %s1127 = sshll.u32 %s3, 4
      %s1128 = int_to_ptr.hbm [resolvable:$true] %s1127
      %1130 = dma.vmem_to_hbm [thread:$0]  %s1126, 16, %s1128, [#allocation4]
    $region25: #{tpu_custom_call.1} parent=1 // pred_fallthru
      _
    // Predicated region
    $region26: #{tpu_custom_call.1} parent=1 // pred_check
      _
    $region27: #{tpu_custom_call.1} parent=1 // pred_check_branch
      %1132 = sbr.rel (0) target = $region29
    $region28: #{tpu_custom_call.1} parent=1 // pred_region
      %1134 = dma.done [#allocation4], 16
    $region29: #{tpu_custom_call.1} parent=1 // pred_fallthru
      _
    %1135 = vsyncpa [#allocation4], 1

</llo_original>
